<compile_context>
chip_gen: v5e
topology: v5e:2x2
jax: 0.10.0
libtpu: 0.0.40
codegen_flags: <defaults>
</compile_context>

<pallas_src>
import jax
import jax.numpy as jnp
from jax.experimental import pallas as pl
from jax.experimental.pallas import tpu as pltpu


def make_attention_kernel(clip_value: float, logit_clipping: bool, matmul_dtype=None):
    def kernel(dec_proj_ref, w_enc_ref, v_ref, enc_ref, mask_ref, out_ref):
        enc = enc_ref[...]                       # (Ts, B, E)  original seq-major layout
        Ts, B, E = enc.shape
        w_enc = w_enc_ref[...]                   # (E, D)
        D = w_enc.shape[1]
        dec_proj = dec_proj_ref[...]             # (B, D) == dec @ W[:D] + b   (hoisted)
        v_row = v_ref[...]                       # (1, D)

        lhs = enc.reshape(Ts * B, E)
        rhs = w_enc
        if matmul_dtype is not None:             # optional bf16 MXU inputs (v6e/v7x)
            lhs = lhs.astype(matmul_dtype)
            rhs = rhs.astype(matmul_dtype)
        enc_part = jnp.dot(lhs, rhs, preferred_element_type=jnp.float32)
        enc_part = enc_part.reshape(Ts, B, D)    # (Ts, B, D)

        # TODO(synk): for D << 128, pack 4 D-columns per 128-lane vreg before the
        # tanh to recover EUP/VPU lane utilization (see perf review item 11).
        energy = jnp.tanh(enc_part + dec_proj[None, :, :])            # (Ts, B, D)

        # energy @ v as a VPU multiply + lane reduce instead of an N=1 MXU matmul.
        scores = jnp.sum(energy * v_row[0][None, None, :], axis=-1)   # (Ts, B)
        if logit_clipping:
            scores = clip_value * jnp.tanh(scores)

        scores = jnp.transpose(scores)           # (B, Ts): lane-dense output slab
        mask = mask_ref[...]                     # (B, Ts) int32
        out_ref[...] = jnp.where(mask == 0, -jnp.inf, scores).astype(out_ref.dtype)

    return kernel


def _pick_tile_s(S, B, E, *, budget_bytes=4 << 20):
    """Rows of enc per grid step: one full tile if it fits the per-buffer budget,
    otherwise the largest multiple of 128 that does (keeps double-buffering
    comfortably inside v7x's 32 MiB scoped VMEM)."""
    row_bytes = B * E * 4
    max_rows = max(1, budget_bytes // row_bytes)
    if S <= max(max_rows, 128):
        return S, 0                              # single full-extent tile, grid=(1,)
    tile = max(128, (max_rows // 128) * 128)
    pad = (-S) % tile
    return tile, pad


def attention_forward(decoder_output, encoder_outputs, mask, params,
                      *, logit_clipping=True, clip_value=10.0,
                      matmul_dtype=None, tile_s=None):
    """decoder_output: (B, D); encoder_outputs: (S, B, E) (seq-major, as in PyTorch);
    mask: (B, S) int (0 => masked with -inf). Returns (B, S) attention logits."""
    w, b, v = params["w"], params["b"], params["v"]
    S, B, E = encoder_outputs.shape
    D = decoder_output.shape[1]

    # Split the concat-Linear weight (concat order = [decoder, encoder]) and
    # hoist the tiny decoder projection + bias out of the per-tile body.
    w_dec = w[:D, :]                                   # (D, D)
    w_enc = w[D:, :]                                   # (E, D)
    dec_proj = decoder_output @ w_dec + b[None, :]     # (B, D)  -- tiny, computed once
    v_row = v.reshape(1, D)
    mask = mask.astype(jnp.int32)

    if tile_s is None:
        tile_s, pad = _pick_tile_s(S, B, E)
    else:
        pad = (-S) % tile_s
    if pad:
        # TODO(synk): the pad copies the big tensor once; a remainder-tile kernel
        # (pl.BoundedSlice / masked last step) would avoid this extra HBM pass.
        encoder_outputs = jnp.pad(encoder_outputs, ((0, pad), (0, 0), (0, 0)))
        mask = jnp.pad(mask, ((0, 0), (0, pad)))       # padded cols => mask==0 => -inf, sliced off
    S_pad = S + pad
    grid = (S_pad // tile_s,)

    kernel = make_attention_kernel(float(clip_value), logit_clipping, matmul_dtype)
    out = pl.pallas_call(
        kernel,
        out_shape=jax.ShapeDtypeStruct((B, S_pad), jnp.float32),
        grid=grid,
        in_specs=[
            pl.BlockSpec((B, D), lambda s: (0, 0)),             # dec_proj (small, resident)
            pl.BlockSpec((E, D), lambda s: (0, 0)),             # w_enc    (small, resident)
            pl.BlockSpec((1, D), lambda s: (0, 0)),             # v        (small, resident)
            pl.BlockSpec((tile_s, B, E), lambda s: (s, 0, 0)),  # enc: seq-major, tiled over S
            pl.BlockSpec((B, tile_s), lambda s: (0, s)),        # mask tile
        ],
        out_specs=pl.BlockSpec((B, tile_s), lambda s: (0, s)),
        compiler_params=pltpu.CompilerParams(
            dimension_semantics=("parallel",),     # megacore sharding on v7x; no-op on v5e/v6e
            vmem_limit_bytes=32 * 1024 * 1024,
        ),
    )(dec_proj, w_enc, v_row, encoder_outputs, mask)

    return out[:, :S] if pad else out


def init_params(key, enc_dim, dec_dim):
    # nn.Linear(enc_dim + dec_dim, dec_dim) weight is (dec_dim, enc_dim+dec_dim) in torch;
    # we store it transposed as (dec_dim+enc_dim, dec_dim) so the forward does x @ W
    # (row order matches the concat order [decoder, encoder]).
    k1, k2, k3 = jax.random.split(key, 3)
    in_dim = enc_dim + dec_dim
    bound1 = 1.0 / jnp.sqrt(in_dim)
    bound2 = 1.0 / jnp.sqrt(dec_dim)
    w = jax.random.uniform(k1, (in_dim, dec_dim), jnp.float32, -bound1, bound1)
    b = jax.random.uniform(k2, (dec_dim,), jnp.float32, -bound1, bound1)
    v = jax.random.uniform(k3, (dec_dim,), jnp.float32, -bound2, bound2)
    return {"w": w, "b": b, "v": v}


def reference_forward(decoder_output, encoder_outputs, mask, params,
                      *, logit_clipping=True, clip_value=10.0):
    """Pure-JAX reference mirroring the PyTorch forward."""
    w, b, v = params["w"], params["b"], params["v"]
    S, B, _ = encoder_outputs.shape
    dec_rep = jnp.repeat(decoder_output[:, None, :], S, axis=1)          # (B, S, D)
    enc_bse = jnp.transpose(encoder_outputs, (1, 0, 2))                  # (B, S, E)
    cat = jnp.concatenate([dec_rep, enc_bse], axis=2)                    # (B, S, D+E)
    energy = jnp.tanh(cat @ w + b)                                       # (B, S, D)
    attn = energy @ v                                                    # (B, S)
    if logit_clipping:
        attn = clip_value * jnp.tanh(attn)
    return jnp.where(mask == 0, -jnp.inf, attn)


def _check_case(B, S, enc_dim, dec_dim, seed_key, tile_s=None):
    kp, kd, ke, km = jax.random.split(seed_key, 4)
    params = init_params(kp, enc_dim, dec_dim)
    dec = jax.random.normal(kd, (B, dec_dim), jnp.float32)
    enc = jax.random.normal(ke, (S, B, enc_dim), jnp.float32)
    mask = (jax.random.uniform(km, (B, S)) > 0.3).astype(jnp.int32)
    mask = mask.at[:, 0].set(1)   # keep at least one valid position per row

    out = attention_forward(dec, enc, mask, params, tile_s=tile_s)
    out = jax.block_until_ready(out)

    ref = reference_forward(dec, enc, mask, params)
    finite = jnp.isfinite(ref)
    assert out.shape == ref.shape
    assert bool(jnp.all(jnp.isfinite(out) == finite))
    assert bool(jnp.allclose(jnp.where(finite, out, 0.0),
                             jnp.where(finite, ref, 0.0), atol=1e-5, rtol=1e-5))


if __name__ == "__main__":
    key = jax.random.PRNGKey(0)
    k1, k2 = jax.random.split(key)

    # Small demo shape matching the module spec (single full-extent tile, grid=(1,)).
    _check_case(B=2, S=8, enc_dim=32, dec_dim=32, seed_key=k1)

    # Tiled + padded path: grid=(2,), lane-dense 128-wide output slabs, S % tile != 0.
    _check_case(B=2, S=200, enc_dim=32, dec_dim=32, seed_key=k2, tile_s=128)

    print("KERNEL_OK")
</pallas_src>

<mosaic_0001>
module attributes {stable_mosaic.version = 11 : i64} {
  func.func @kernel(%arg0: i32, %arg1: memref<2x32xf32, #tpu.memory_space<vmem>>, %arg2: memref<32x32xf32, #tpu.memory_space<vmem>>, %arg3: memref<1x32xf32, #tpu.memory_space<vmem>>, %arg4: memref<8x2x32xf32, #tpu.memory_space<vmem>>, %arg5: memref<2x8xi32, #tpu.memory_space<vmem>>, %arg6: memref<2x8xf32, #tpu.memory_space<vmem>>) attributes {dimension_semantics = [#tpu.dimension_semantics<parallel>], iteration_bounds = array<i64: 1>, scalar_prefetch = 0 : i64, scratch_operands = 0 : i64, tpu.core_type = #tpu.core_type<tc>, window_params = [{pipeline_mode = #tpu.pipeline_mode<synchronous>, transform_indices = @transform_0, window_bounds = array<i64: 2, 32>}, {pipeline_mode = #tpu.pipeline_mode<synchronous>, transform_indices = @transform_1, window_bounds = array<i64: 32, 32>}, {pipeline_mode = #tpu.pipeline_mode<synchronous>, transform_indices = @transform_2, window_bounds = array<i64: 1, 32>}, {transform_indices = @transform_3, window_bounds = array<i64: 8, 2, 32>}, {transform_indices = @transform_4, window_bounds = array<i64: 2, 8>}, {transform_indices = @transform_5, window_bounds = array<i64: 2, 8>}]} {
    %c0 = arith.constant 0 : index
    %c0_0 = arith.constant 0 : index
    %c0_1 = arith.constant 0 : index
    %0 = vector.load %arg4[%c0, %c0_0, %c0_1] : memref<8x2x32xf32, #tpu.memory_space<vmem>>, vector<8x2x32xf32>
    %c0_2 = arith.constant 0 : index
    %c0_3 = arith.constant 0 : index
    %1 = vector.load %arg2[%c0_2, %c0_3] : memref<32x32xf32, #tpu.memory_space<vmem>>, vector<32x32xf32>
    %c0_4 = arith.constant 0 : index
    %c0_5 = arith.constant 0 : index
    %2 = vector.load %arg1[%c0_4, %c0_5] : memref<2x32xf32, #tpu.memory_space<vmem>>, vector<2x32xf32>
    %c0_6 = arith.constant 0 : index
    %c0_7 = arith.constant 0 : index
    %3 = vector.load %arg3[%c0_6, %c0_7] : memref<1x32xf32, #tpu.memory_space<vmem>>, vector<1x32xf32>
    %4 = vector.shape_cast %0 : vector<8x2x32xf32> to vector<16x32xf32>
    %cst = arith.constant dense<0.000000e+00> : vector<16x32xf32>
    %5 = tpu.matmul %4, %1, %cst {dimension_numbers = #tpu.dot_dimension_numbers<[1], [0], [0], [1], [0, 0, 1, 1], [], []>} : vector<16x32xf32>, vector<32x32xf32>, vector<16x32xf32> -> vector<16x32xf32>
    %6 = vector.shape_cast %5 : vector<16x32xf32> to vector<8x2x32xf32>
    %7 = vector.shape_cast %2 : vector<2x32xf32> to vector<1x2x32xf32>
    %8 = vector.broadcast %7 : vector<1x2x32xf32> to vector<8x2x32xf32>
    %9 = arith.addf %6, %8 : vector<8x2x32xf32>
    %10 = math.tanh %9 : vector<8x2x32xf32>
    %11 = vector.shape_cast %3 : vector<1x32xf32> to vector<32xf32>
    %12 = vector.shape_cast %11 : vector<32xf32> to vector<1x1x32xf32>
    %13 = vector.broadcast %12 : vector<1x1x32xf32> to vector<8x2x32xf32>
    %14 = arith.mulf %10, %13 : vector<8x2x32xf32>
    %cst_8 = arith.constant dense<0.000000e+00> : vector<8x2xf32>
    %15 = vector.multi_reduction <add>, %14, %cst_8 [2] : vector<8x2x32xf32> to vector<8x2xf32>
    %16 = math.tanh %15 : vector<8x2xf32>
    %cst_9 = arith.constant 1.000000e+01 : f32
    %17 = vector.broadcast %cst_9 : f32 to vector<8x2xf32>
    %18 = arith.mulf %17, %16 : vector<8x2xf32>
    %19 = tpu.transpose %18, [1, 0] : vector<8x2xf32> -> vector<2x8xf32>
    %c0_10 = arith.constant 0 : index
    %c0_11 = arith.constant 0 : index
    %20 = vector.load %arg5[%c0_10, %c0_11] : memref<2x8xi32, #tpu.memory_space<vmem>>, vector<2x8xi32>
    %c0_i32 = arith.constant 0 : i32
    %21 = vector.broadcast %c0_i32 : i32 to vector<2x8xi32>
    %22 = arith.cmpi eq, %20, %21 : vector<2x8xi32>
    %cst_12 = arith.constant 0xFF800000 : f32
    %23 = vector.broadcast %cst_12 : f32 to vector<2x8xf32>
    %24 = arith.select %22, %23, %19 : vector<2x8xi1>, vector<2x8xf32>
    %c0_13 = arith.constant 0 : index
    %c0_14 = arith.constant 0 : index
    %25 = vector.load %arg6[%c0_13, %c0_14] : memref<2x8xf32, #tpu.memory_space<vmem>>, vector<2x8xf32>
    tpu.vector_store %arg6[%c0_13, %c0_14], %24 {strides = array<i32>} : memref<2x8xf32, #tpu.memory_space<vmem>>, vector<2x8xf32>,
    return
  }
  func.func @transform_0(%arg0: i32) -> (i32, i32) {
    %c0_i32 = arith.constant 0 : i32
    %c0_i32_0 = arith.constant 0 : i32
    %c0_i32_1 = arith.constant 0 : i32
    return %c0_i32, %c0_i32_0 : i32, i32
  }
  func.func @transform_1(%arg0: i32) -> (i32, i32) {
    %c0_i32 = arith.constant 0 : i32
    %c0_i32_0 = arith.constant 0 : i32
    %c0_i32_1 = arith.constant 0 : i32
    return %c0_i32, %c0_i32_0 : i32, i32
  }
  func.func @transform_2(%arg0: i32) -> (i32, i32) {
    %c0_i32 = arith.constant 0 : i32
    %c0_i32_0 = arith.constant 0 : i32
    %c0_i32_1 = arith.constant 0 : i32
    return %c0_i32, %c0_i32_0 : i32, i32
  }
  func.func @transform_3(%arg0: i32) -> (i32, i32, i32) {
    %c0_i32 = arith.constant 0 : i32
    %c0_i32_0 = arith.constant 0 : i32
    %c0_i32_1 = arith.constant 0 : i32
    return %arg0, %c0_i32, %c0_i32_0 : i32, i32, i32
  }
  func.func @transform_4(%arg0: i32) -> (i32, i32) {
    %c0_i32 = arith.constant 0 : i32
    %c0_i32_0 = arith.constant 0 : i32
    return %c0_i32, %arg0 : i32, i32
  }
  func.func @transform_5(%arg0: i32) -> (i32, i32) {
    %c0_i32 = arith.constant 0 : i32
    %c0_i32_0 = arith.constant 0 : i32
    return %c0_i32, %arg0 : i32, i32
  }
}

</mosaic_0001>

<llo_original>
// kernel: tpu_custom_call.1
$region0: #{tpu_custom_call.1}
  #allocation0 [shape = 'u32[]', space=smem, size = 0x4, offset = 0x4, fixed_abs, tag = 'smem constant byte address 0x4 - core index']
  #allocation1 [shape = 'u32[72,128]{1,0:T(1,128)}', space=vmem, size = 0x9000, scoped, tag = 'internal scratch']
  %s0 = inlined_call_operand.hbm [shape: f32[2,32], index: 0, kind: input, shape index: {}]
  %s1 = inlined_call_operand.hbm [shape: f32[32,32], index: 1, kind: input, shape index: {}]
  %s2 = inlined_call_operand.vmem [shape: f32[1,32], index: 2, kind: input, shape index: {}]
  %s3 = inlined_call_operand.hbm [shape: f32[8,2,32], index: 3, kind: input, shape index: {}]
  %s4 = inlined_call_operand.vmem [shape: s32[2,8], index: 4, kind: input, shape index: {}]
  %s5 = inlined_call_operand.hbm [shape: f32[2,8], index: 5, kind: output, shape index: {}]
  %s6 = sld [smem:[#allocation0]]
  $region42: #{tpu_custom_call.1} parent=0
    _
  %s8 = ssub.s32 1, %s6
  %s9 = scalar_select 0, %s8, %s6
  $region1: #{tpu_custom_call.1} parent=0
    #allocation2 [shape = 'u8[1024]{0}', space=vmem, size = 0x400, scoped, tag = 'input window, operand 0, single buffered']
    #allocation3 [shape = 's32[1]{0}', space=sflag, size = 0x4, scoped, tag = 'scoped memory for tpu_custom_call.1']
    #allocation4 [shape = 's32[1]{0}', space=sflag, size = 0x4, scoped, tag = 'scoped memory for tpu_custom_call.1']
    #allocation5 [shape = 'u8[16384]{0}', space=vmem, size = 0x4000, scoped, tag = 'input window, operand 1, single buffered']
    #allocation6 [shape = 's32[1]{0}', space=sflag, size = 0x4, scoped, tag = 'scoped memory for tpu_custom_call.1']
    #allocation7 [shape = 'u8[8192]{0}', space=vmem, size = 0x2000, scoped, tag = 'input window, operand 3, single buffered']
    #allocation8 [shape = 'u8[1024]{0}', space=vmem, size = 0x400, scoped, tag = 'output window, operand 0, single buffered']
    %10 = vsyncpa [#allocation3], 0
    %11 = vsyncpa [#allocation6], 0
    %12 = vsyncpa [#allocation4], 0
    // Predicated region
    $region2: #{tpu_custom_call.1} parent=1 // pred_check
      _
    $region3: #{tpu_custom_call.1} parent=1 // pred_check_branch
      %14 = sbr.rel (0) target = $region5
    $region4: #{tpu_custom_call.1} parent=1 // pred_region
      %16 = vsyncadd [#allocation3], 0
      %s18 = sshll.u32 %s0, 4
      %s19 = int_to_ptr.hbm [resolvable:$true] %s18
      %s20 = sshll.u32 [#allocation2], 4
      %s21 = int_to_ptr.vmem [resolvable:$true] %s20
      %23 = dma.hbm_to_vmem [thread:$0]  %s19, 32, %s21, [#allocation3]
    $region5: #{tpu_custom_call.1} parent=1 // pred_fallthru
      _
    // Predicated region
    $region6: #{tpu_custom_call.1} parent=1 // pred_check
      _
    $region7: #{tpu_custom_call.1} parent=1 // pred_check_branch
      %25 = sbr.rel (0) target = $region9
    $region8: #{tpu_custom_call.1} parent=1 // pred_region
      %27 = vsyncadd [#allocation6], 0
      %s28 = sshll.u32 %s1, 4
      %s29 = int_to_ptr.hbm [resolvable:$true] %s28
      %s30 = sshll.u32 [#allocation5], 4
      %s31 = int_to_ptr.vmem [resolvable:$true] %s30
      %36 = dma.hbm_to_vmem [thread:$0]  %s29, 512, %s31, [#allocation6], 128, 128, 8
    $region9: #{tpu_custom_call.1} parent=1 // pred_fallthru
      _
    // Predicated region
    $region10: #{tpu_custom_call.1} parent=1 // pred_check
      _
    $region11: #{tpu_custom_call.1} parent=1 // pred_check_branch
      %38 = sbr.rel (0) target = $region13
    $region12: #{tpu_custom_call.1} parent=1 // pred_region
      _
    $region13: #{tpu_custom_call.1} parent=1 // pred_fallthru
      _
    // Predicated region
    $region14: #{tpu_custom_call.1} parent=1 // pred_check
      _
    $region15: #{tpu_custom_call.1} parent=1 // pred_check_branch
      %40 = sbr.rel (0) target = $region17
    $region16: #{tpu_custom_call.1} parent=1 // pred_region
      %42 = vsyncadd [#allocation6], 0
      %s43 = sshll.u32 %s3, 4
      %s44 = int_to_ptr.hbm [resolvable:$true] %s43
      %s45 = sshll.u32 [#allocation7], 4
      %s46 = int_to_ptr.vmem [resolvable:$true] %s45
      %51 = dma.hbm_to_vmem [thread:$0]  %s44, 256, %s46, [#allocation6], 32, 32, 2
    $region17: #{tpu_custom_call.1} parent=1 // pred_fallthru
      _
    // Predicated region
    $region18: #{tpu_custom_call.1} parent=1 // pred_check
      _
    $region19: #{tpu_custom_call.1} parent=1 // pred_check_branch
      %53 = sbr.rel (0) target = $region21
    $region20: #{tpu_custom_call.1} parent=1 // pred_region
      _
    $region21: #{tpu_custom_call.1} parent=1 // pred_fallthru
      _
    // Predicated region
    $region22: #{tpu_custom_call.1} parent=1 // pred_check
      _
    $region23: #{tpu_custom_call.1} parent=1 // pred_check_branch
      %55 = sbr.rel (0) target = $region25
    $region24: #{tpu_custom_call.1} parent=1 // pred_region
      %57 = dma.done [#allocation3], 32
    $region25: #{tpu_custom_call.1} parent=1 // pred_fallthru
      _
    // Predicated region
    $region26: #{tpu_custom_call.1} parent=1 // pred_check
      _
    $region27: #{tpu_custom_call.1} parent=1 // pred_check_branch
      %59 = sbr.rel (0) target = $region29
    $region28: #{tpu_custom_call.1} parent=1 // pred_region
      %61 = dma.done [#allocation6], 512
    $region29: #{tpu_custom_call.1} parent=1 // pred_fallthru
      _
    // Predicated region
    $region30: #{tpu_custom_call.1} parent=1 // pred_check
      _
    $region31: #{tpu_custom_call.1} parent=1 // pred_check_branch
      %63 = sbr.rel (0) target = $region33
    $region32: #{tpu_custom_call.1} parent=1 // pred_region
      %65 = dma.done [#allocation6], 256
    $region33: #{tpu_custom_call.1} parent=1 // pred_fallthru
      _
    %v66 = vld [vmem:[#allocation7] sm:$0x3]
    %v67 = vld [vmem:[#allocation7 + $0x2] sm:$0x3]
    %v68 = vld [vmem:[#allocation7 + $0x4] sm:$0x3]
    %v69 = vld [vmem:[#allocation7 + $0x6] sm:$0x3]
    %v70 = vld [vmem:[#allocation7 + $0x8] sm:$0x3]
    %v71 = vld [vmem:[#allocation7 + $0xa] sm:$0x3]
    %v72 = vld [vmem:[#allocation7 + $0xc] sm:$0x3]
    %v73 = vld [vmem:[#allocation7 + $0xe] sm:$0x3]
    %v74 = vld [vmem:[#allocation5] sm:$0xff]
    %v75 = vld [vmem:[#allocation5 + $0x8] sm:$0xff]
    %v76 = vld [vmem:[#allocation5 + $0x10] sm:$0xff]
    %v77 = vld [vmem:[#allocation5 + $0x18] sm:$0xff]
    %v78 = vld [vmem:[#allocation2] sm:$0x3]
    %v79 = vld [vmem:[%s2] sm:$0x1]
    %88 = vst [vmem:[#allocation1] ss:$4 sm:$0xff] %v66
    %s89 = scalar_lea.vmem [#allocation1], 1
    %90 = vst [vmem:[%s89] ss:$4 sm:$0xff] %v67
    %s91 = scalar_lea.vmem [#allocation1], 2
    %92 = vst [vmem:[%s91] ss:$4 sm:$0xff] %v68
    %s93 = scalar_lea.vmem [#allocation1], 3
    %94 = vst [vmem:[%s93] ss:$4 sm:$0xff] %v69
    %s95 = scalar_lea.vmem [#allocation1], 32
    %96 = vst [vmem:[%s95] ss:$4 sm:$0xff] %v70
    %s97 = scalar_lea.vmem [#allocation1], 33
    %98 = vst [vmem:[%s97] ss:$4 sm:$0xff] %v71
    %s99 = scalar_lea.vmem [#allocation1], 34
    %100 = vst [vmem:[%s99] ss:$4 sm:$0xff] %v72
    %s101 = scalar_lea.vmem [#allocation1], 35
    %102 = vst [vmem:[%s101] ss:$4 sm:$0xff] %v73
    %v103 = vld.sshfl [vmem:[#allocation1] sm:$0xff pattern:$0x73625140]
    %v104 = vld.sshfl [vmem:[#allocation1 + $0x20] sm:$0xff pattern:$0x73625140]
    %vm105 = vcmask 261120
    %v106 = vsel %vm105, %v103, 0
    %v108 = vsel %vm105, %v104, 0
    %110 = vmatpush.msra.mxu0 0.0
    %111 = vmatpush.msra.mxu0 0.0
    %112 = vmatpush.msra.mxu0 0.0
    %113 = vmatpush.msra.mxu0 0.0
    %114 = vmatpush.msra.mxu0 0.0
    %115 = vmatpush.msra.mxu0 0.0
    %116 = vmatpush.msra.mxu0 0.0
    %117 = vmatpush.msra.mxu0 0.0
    %118 = vmatpush.msra.mxu0 0.0
    %119 = vmatpush.msra.mxu0 0.0
    %120 = vmatpush.msra.mxu0 0.0
    %121 = vmatpush.msra.mxu0 0.0
    %122 = vmatpush.msra.mxu0 %v77
    %123 = vmatpush.msra.mxu0 %v76
    %124 = vmatpush.msra.mxu0 %v75
    %125 = vmatpush.msra.mxu0 %v74
    %126 = vmatmul.f32.gmra.mxu0 %v106
    %v127 = vpop.f32.mrf.mxu0
    %v128 = vadd.f32 0.0, %v127
    %129 = vmatmul.f32.gmra.mxu0 %v108
    %v130 = vpop.f32.mrf.mxu0
    %v131 = vadd.f32 0.0, %v130
    %132 = vdwg.mxu0
    %v135 = vrot.slane %v128, 2
    %v136 = vrot.slane %v128, 4
    %v137 = vrot.slane %v128, 6
    %v138 = vrot.slane %v131, 2
    %v139 = vrot.slane %v131, 4
    %v140 = vrot.slane %v131, 6
    %v147 = vadd.f32 %v128, %v78
    %v148 = vadd.f32 %v135, %v78
    %v149 = vadd.f32 %v136, %v78
    %v150 = vadd.f32 %v137, %v78
    %v151 = vadd.f32 %v131, %v78
    %v152 = vadd.f32 %v138, %v78
    %v153 = vadd.f32 %v139, %v78
    %v154 = vadd.f32 %v140, %v78
    %v155 = vtanh.pop %v147
    %v156 = vtanh.pop %v148
    %v157 = vtanh.pop %v149
    %v158 = vtanh.pop %v150
    %v159 = vtanh.pop %v151
    %v160 = vtanh.pop %v152
    %v161 = vtanh.pop %v153
    %v162 = vtanh.pop %v154
    %v164 = vperm.slane %v79, 0
    %v166 = vmul.f32 %v155, %v164
    %v167 = vmul.f32 %v156, %v164
    %v168 = vmul.f32 %v157, %v164
    %v169 = vmul.f32 %v158, %v164
    %v170 = vmul.f32 %v159, %v164
    %v171 = vmul.f32 %v160, %v164
    %v172 = vmul.f32 %v161, %v164
    %v173 = vmul.f32 %v162, %v164
    %vm174 = vcmask 254976
    %v175 = vsel %vm174, %v166, 0.0
    %176 = vadd.xlane.f32.xlu0 %v175
    %v177 = vpop.xlane.xlu0 %176
    %v178 = vsel %vm174, %v167, 0.0
    %179 = vadd.xlane.f32.xlu0 %v178
    %v180 = vpop.xlane.xlu0 %179
    %v181 = vsel %vm174, %v168, 0.0
    %182 = vadd.xlane.f32.xlu0 %v181
    %v183 = vpop.xlane.xlu0 %182
    %v184 = vsel %vm174, %v169, 0.0
    %185 = vadd.xlane.f32.xlu0 %v184
    %v186 = vpop.xlane.xlu0 %185
    %v187 = vsel %vm174, %v170, 0.0
    %188 = vadd.xlane.f32.xlu0 %v187
    %v189 = vpop.xlane.xlu0 %188
    %v190 = vsel %vm174, %v171, 0.0
    %191 = vadd.xlane.f32.xlu0 %v190
    %v192 = vpop.xlane.xlu0 %191
    %v193 = vsel %vm174, %v172, 0.0
    %194 = vadd.xlane.f32.xlu0 %v193
    %v195 = vpop.xlane.xlu0 %194
    %v196 = vsel %vm174, %v173, 0.0
    %197 = vadd.xlane.f32.xlu0 %v196
    %v198 = vpop.xlane.xlu0 %197
    %v199 = vtanh.pop %v177
    %v200 = vtanh.pop %v180
    %v201 = vtanh.pop %v183
    %v202 = vtanh.pop %v186
    %v203 = vtanh.pop %v189
    %v204 = vtanh.pop %v192
    %v205 = vtanh.pop %v195
    %v206 = vtanh.pop %v198
    %v207 = vmul.f32 %v199, 10.0
    %v208 = vmul.f32 %v200, 10.0
    %v209 = vmul.f32 %v201, 10.0
    %v210 = vmul.f32 %v202, 10.0
    %v211 = vmul.f32 %v203, 10.0
    %v212 = vmul.f32 %v204, 10.0
    %v213 = vmul.f32 %v205, 10.0
    %v214 = vmul.f32 %v206, 10.0
    %v223 = vlaneseq
    %v224 = vand.u32 %v223, 127
    %v225 = vperm.slane %v207, %v224
    %v226 = vperm.slane %v208, %v224
    %v227 = vperm.slane %v209, %v224
    %v228 = vperm.slane %v210, %v224
    %v229 = vperm.slane %v211, %v224
    %v230 = vperm.slane %v212, %v224
    %v231 = vperm.slane %v213, %v224
    %v232 = vperm.slane %v214, %v224
    %vm233 = vcmask 1041409
    %v234 = vsel %vm233, %v226, %v225
    %vm235 = vcmask 1042434
    %v236 = vsel %vm235, %v227, %v234
    %vm237 = vcmask 1043459
    %v238 = vsel %vm237, %v228, %v236
    %vm239 = vcmask 1044484
    %v240 = vsel %vm239, %v229, %v238
    %vm241 = vcmask 1045509
    %v242 = vsel %vm241, %v230, %v240
    %vm243 = vcmask 1046534
    %v244 = vsel %vm243, %v231, %v242
    %vm245 = vcmask 1047559
    %v246 = vsel %vm245, %v232, %v244
    %248 = vxpose.xlu0.b32.start [1/16] %v246, 128
    %249 = vxpose.xlu0.b32.cont [2/16] 0.0, 128
    %250 = vxpose.xlu0.b32.cont [3/16] 0.0, 128
    %251 = vxpose.xlu0.b32.cont [4/16] 0.0, 128
    %252 = vxpose.xlu0.b32.cont [5/16] 0.0, 128
    %253 = vxpose.xlu0.b32.cont [6/16] 0.0, 128
    %254 = vxpose.xlu0.b32.cont [7/16] 0.0, 128
    %255 = vxpose.xlu0.b32.cont [8/16] 0.0, 128
    %256 = vxpose.xlu0.b32.cont [9/16] 0.0, 128
    %257 = vxpose.xlu0.b32.cont [10/16] 0.0, 128
    %258 = vxpose.xlu0.b32.cont [11/16] 0.0, 128
    %259 = vxpose.xlu0.b32.cont [12/16] 0.0, 128
    %260 = vxpose.xlu0.b32.cont [13/16] 0.0, 128
    %261 = vxpose.xlu0.b32.cont [14/16] 0.0, 128
    %262 = vxpose.xlu0.b32.cont [15/16] 0.0, 128
    %263 = vxpose.xlu0.b32.end [16/16] 0.0, 128
    %v264 = vpop.trf.xlu0
    %v265 = vpop.trf.xlu0
    %v266 = vpop.trf.xlu0
    %v267 = vpop.trf.xlu0
    %v268 = vpop.trf.xlu0
    %v269 = vpop.trf.xlu0
    %v270 = vpop.trf.xlu0
    %v271 = vpop.trf.xlu0
    %v272 = vpop.trf.xlu0
    %v273 = vpop.trf.xlu0
    %v274 = vpop.trf.xlu0
    %v275 = vpop.trf.xlu0
    %v276 = vpop.trf.xlu0
    %v277 = vpop.trf.xlu0
    %v278 = vpop.trf.xlu0
    %v279 = vpop.trf.xlu0
    %v280 = vld [vmem:[%s4] sm:$0x3]
    %vm281 = vcmp.eq.s32.totalorder %v280, 0
    %v282 = vsel %vm281, -inf, %v264
    %vm283 = vcmask 58368
    %284 = vst.msk [vmem:[#allocation8] sm:$0x3] %vm283, %v282
    // Predicated region
    $region34: #{tpu_custom_call.1} parent=1 // pred_check
      _
    $region35: #{tpu_custom_call.1} parent=1 // pred_check_branch
      %286 = sbr.rel (0) target = $region37
    $region36: #{tpu_custom_call.1} parent=1 // pred_region
      %288 = vsyncadd [#allocation4], 0
      %s290 = sshll.u32 [#allocation8], 4
      %s291 = int_to_ptr.vmem [resolvable:$true] %s290
      %s292 = sshll.u32 %s5, 4
      %s293 = int_to_ptr.hbm [resolvable:$true] %s292
      %295 = dma.vmem_to_hbm [thread:$0]  %s291, 32, %s293, [#allocation4]
    $region37: #{tpu_custom_call.1} parent=1 // pred_fallthru
      _
    // Predicated region
    $region38: #{tpu_custom_call.1} parent=1 // pred_check
      _
    $region39: #{tpu_custom_call.1} parent=1 // pred_check_branch
      %297 = sbr.rel (0) target = $region41
    $region40: #{tpu_custom_call.1} parent=1 // pred_region
      %299 = dma.done [#allocation4], 32
    $region41: #{tpu_custom_call.1} parent=1 // pred_fallthru
      _
    %300 = vsyncpa [#allocation3], 1
    %301 = vsyncpa [#allocation6], 1
    %302 = vsyncpa [#allocation4], 1

</llo_original>
